<compile_context>
chip_gen: v6e
topology: v6e:2x2x1
jax: 0.10.0
libtpu: 0.0.40
codegen_flags: <defaults>
</compile_context>

<pallas_src>
import functools

import jax
import jax.numpy as jnp
from jax.experimental import pallas as pl
from jax.experimental.pallas import tpu as pltpu


# eps^2 with eps = 1e-12: guards zero rows (raw PyTorch division would NaN;
# this matches the F.normalize-style clamp and keeps padded rows finite).
_EPS_SQ = 1e-24


def _round_up(a: int, m: int) -> int:
    return (a + m - 1) // m * m


# ---------------------------------------------------------------------------
# Kernels. Normalization is pre-folded into both operands, so the body is a
# pure MXU matmul (bf16 or f32 operands, f32 accumulation) + lane-dense store.
# ---------------------------------------------------------------------------
def _matmul_kernel(x_ref, ct_ref, o_ref):
    # x_ref:  [TM, TK]  L2-normalized features (MXU dtype)
    # ct_ref: [TK, TN]  L2-normalized centroids, pre-transposed (MXU dtype)
    # o_ref:  [TM, TN]  logits tile
    o_ref[...] = jnp.dot(
        x_ref[...], ct_ref[...],
        preferred_element_type=jnp.float32).astype(o_ref.dtype)


def _matmul_kernel_ktiled(x_ref, ct_ref, o_ref, acc_ref):
    # Fallback for huge feature dims that do not fit VMEM in one K pass.
    k = pl.program_id(2)

    @pl.when(k == 0)
    def _():
        acc_ref[...] = jnp.zeros_like(acc_ref)

    acc_ref[...] += jnp.dot(
        x_ref[...], ct_ref[...], preferred_element_type=jnp.float32)

    @pl.when(k == pl.num_programs(2) - 1)
    def _():
        o_ref[...] = acc_ref[...].astype(o_ref.dtype)


# ---------------------------------------------------------------------------
# Weight-side prepack: amortize pad + normalize + transpose + cast across calls.
# ---------------------------------------------------------------------------
def prepack_centroids(centroids, *, mxu_dtype=jnp.bfloat16):
    """Returns the L2-normalized, transposed, MXU-dtype codebook [k_pad, n_pad]."""
    nclass, nfeat = centroids.shape
    k_pad = _round_up(nfeat, 128)
    n_pad = _round_up(nclass, 128)
    c = jnp.pad(centroids.astype(jnp.float32),
                ((0, n_pad - nclass), (0, k_pad - nfeat)))
    inv_c = jax.lax.rsqrt(jnp.sum(c * c, axis=-1, keepdims=True) + _EPS_SQ)
    return (c * inv_c).T.astype(mxu_dtype)          # [k_pad, n_pad]


def _vmem_budget_bytes() -> int:
    cap = 64 * 1024 * 1024                           # conservative: v7x per-TC
    try:
        info = pltpu.get_tpu_info()
        cap = int(getattr(info, "vmem_capacity_bytes", cap)) or cap
    except Exception:
        pass
    # Leave headroom for Mosaic internals / semaphores / spills.
    return max(cap - 16 * 1024 * 1024, 24 * 1024 * 1024)


def _select_tiles(B, n_base, k_base, tm, tn, x_bytes, c_bytes, o_bytes, budget):
    """Pick (tile_m, tile_n, tile_k) that fit the VMEM budget; prefer a fully
    resident codebook, then shrink m -> n -> k."""
    b_base = _round_up(max(B, 1), 8)
    tile_m = min(_round_up(tm, 8), b_base)
    tile_n = min(_round_up(tn, 128), n_base)
    tile_k = k_base

    def footprint(tm_, tn_, tk_):
        f = 2 * (tm_ * tk_ * x_bytes + tk_ * tn_ * c_bytes + tm_ * tn_ * o_bytes)
        if tk_ < k_base:
            f += tm_ * tn_ * 4                       # f32 accumulator scratch
        return f + (2 << 20)                         # slack for Mosaic internals

    # Whole codebook resident across batch tiles when it fits: with
    # tile_n == n_pad its block index is constant -> DMA'd from HBM once.
    if footprint(tile_m, n_base, tile_k) <= budget:
        tile_n = n_base

    while footprint(tile_m, tile_n, tile_k) > budget and tile_m > 8:
        tile_m = _round_up(tile_m // 2, 8)
    while footprint(tile_m, tile_n, tile_k) > budget and tile_n > 128:
        tile_n = _round_up(tile_n // 2, 128)
    while footprint(tile_m, tile_n, tile_k) > budget and tile_k > 128:
        tile_k = _round_up(tile_k // 2, 128)

    return tile_m, tile_n, tile_k, footprint(tile_m, tile_n, tile_k)


# ---------------------------------------------------------------------------
# Core 2-D implementation (x already flattened to [B, nfeat]).
# ---------------------------------------------------------------------------
def _cossim_2d(x2, ct_packed, nclass, *, tm, tn, mxu_dtype):
    B, nfeat = x2.shape
    k_pad0, n_pad0 = ct_packed.shape
    assert k_pad0 >= nfeat and n_pad0 >= nclass, (ct_packed.shape, nfeat, nclass)

    out_dtype = x2.dtype
    x_bytes = jnp.dtype(mxu_dtype).itemsize
    c_bytes = jnp.dtype(ct_packed.dtype).itemsize
    o_bytes = jnp.dtype(out_dtype).itemsize

    budget = _vmem_budget_bytes()
    tile_m, tile_n, tile_k, fp = _select_tiles(
        B, n_pad0, k_pad0, tm, tn, x_bytes, c_bytes, o_bytes, budget)

    b_pad = _round_up(max(B, 1), tile_m)
    n_pad = _round_up(n_pad0, tile_n)
    k_pad = _round_up(k_pad0, tile_k)

    # Feature-side prep fused into the (already required) pad copy: normalize
    # in f32, then cast once to the MXU dtype (2 B/elem in VMEM / HBM DMA).
    x_f32 = jnp.pad(x2.astype(jnp.float32),
                    ((0, b_pad - B), (0, k_pad - nfeat)))
    inv_x = jax.lax.rsqrt(jnp.sum(x_f32 * x_f32, axis=-1, keepdims=True) + _EPS_SQ)
    x_n = (x_f32 * inv_x).astype(mxu_dtype)

    ct = ct_packed
    if (k_pad, n_pad) != (k_pad0, n_pad0):
        ct = jnp.pad(ct, ((0, k_pad - k_pad0), (0, n_pad - n_pad0)))

    gi, gj, gk = b_pad // tile_m, n_pad // tile_n, k_pad // tile_k

    # Pick grid order so that the redundant HBM re-reads hit the smaller operand.
    x_total = b_pad * k_pad * x_bytes
    c_total = n_pad * k_pad * c_bytes
    reads_x_res = x_total + (gi if gj > 1 else 1) * c_total   # i outer, j inner
    reads_c_res = c_total + (gj if gi > 1 else 1) * x_total   # j outer, i inner
    swap = reads_c_res < reads_x_res

    if swap:
        grid = (gj, gi, gk)
        x_map = lambda j, i, k: (i, k)
        c_map = lambda j, i, k: (k, j)
        o_map = lambda j, i, k: (i, j)
        hbm_reads = reads_c_res
    else:
        grid = (gi, gj, gk)
        x_map = lambda i, j, k: (i, k)
        c_map = lambda i, j, k: (k, j)
        o_map = lambda i, j, k: (i, j)
        hbm_reads = reads_x_res

    ktiled = gk > 1
    kernel = _matmul_kernel_ktiled if ktiled else _matmul_kernel
    scratch = [pltpu.VMEM((tile_m, tile_n), jnp.float32)] if ktiled else []

    vmem_limit = int(min(max(fp + (4 << 20), 32 * 1024 * 1024),
                         budget + (8 << 20)))

    out = pl.pallas_call(
        kernel,
        out_shape=jax.ShapeDtypeStruct((b_pad, n_pad), out_dtype),
        grid_spec=pltpu.PrefetchScalarGridSpec(
            num_scalar_prefetch=0,
            grid=grid,
            in_specs=[
                pl.BlockSpec((tile_m, tile_k), x_map),
                pl.BlockSpec((tile_k, tile_n), c_map),
            ],
            out_specs=pl.BlockSpec((tile_m, tile_n), o_map),
            scratch_shapes=scratch,
        ),
        compiler_params=pltpu.CompilerParams(
            dimension_semantics=("parallel", "parallel", "arbitrary"),
            vmem_limit_bytes=vmem_limit,
        ),
        cost_estimate=pl.CostEstimate(
            flops=2 * b_pad * n_pad * k_pad,
            transcendentals=0,
            bytes_accessed=int(hbm_reads + b_pad * n_pad * o_bytes),
        ),
    )(x_n, ct)

    return out[:B, :nclass]


# ---------------------------------------------------------------------------
# Public wrappers.
# ---------------------------------------------------------------------------
@functools.partial(jax.jit, static_argnames=("nclass", "tm", "tn", "mxu_dtype"))
def cossim_packed(x, ct_packed, *, nclass, tm=512, tn=512,
                  mxu_dtype=jnp.bfloat16):
    """Cosine-similarity logits from a prepacked codebook (amortized weights)."""
    orig_lead = x.shape[:-1]
    x2 = x.reshape(-1, x.shape[-1])
    out = _cossim_2d(x2, ct_packed, nclass, tm=tm, tn=tn, mxu_dtype=mxu_dtype)
    return out.reshape(*orig_lead, nclass)


@functools.partial(jax.jit, static_argnames=("tm", "tn", "mxu_dtype"))
def cossim(x, centroids, *, tm=512, tn=512, mxu_dtype=jnp.bfloat16):
    """Cosine-similarity logits.

    x:         [..., nfeat]
    centroids: [nclass, nfeat]
    returns    [..., nclass]
    """
    orig_lead = x.shape[:-1]
    nfeat = x.shape[-1]
    nclass, nfeat_c = centroids.shape
    assert nfeat == nfeat_c, (nfeat, nfeat_c)

    ct_packed = prepack_centroids(centroids, mxu_dtype=mxu_dtype)
    x2 = x.reshape(-1, nfeat)
    out = _cossim_2d(x2, ct_packed, nclass, tm=tm, tn=tn, mxu_dtype=mxu_dtype)
    return out.reshape(*orig_lead, nclass)


def cossim_ref(x, centroids):
    xn = x / jnp.linalg.norm(x, axis=-1, keepdims=True)
    cn = centroids / jnp.linalg.norm(centroids, axis=-1, keepdims=True)
    return xn @ cn.T


if __name__ == "__main__":
    key = jax.random.PRNGKey(0)
    k_x, k_c = jax.random.split(key)

    B, nfeat, nclass = 8, 32, 16

    # Deterministic synthetic inputs / parameters (codebook ~ torch.randn).
    x = jax.random.normal(k_x, (B, nfeat), dtype=jnp.float32)
    centroids = jax.random.normal(k_c, (nclass, nfeat), dtype=jnp.float32)

    ref = cossim_ref(x, centroids)

    # Exactness check with f32 MXU operands.
    out_f32 = jax.block_until_ready(cossim(x, centroids, mxu_dtype=jnp.float32))
    assert out_f32.shape == (B, nclass)
    assert jnp.allclose(out_f32, ref, atol=1e-5, rtol=1e-5), "f32 path mismatch"

    # Default (fast) path: bf16 normalized operands, f32 MXU accumulation.
    out = jax.block_until_ready(cossim(x, centroids))
    assert out.shape == (B, nclass)
    assert jnp.allclose(out, ref, atol=2e-2, rtol=2e-2), "bf16 path mismatch"

    # Prepacked-codebook path (weights processed once, reused across calls).
    ct_packed = jax.block_until_ready(prepack_centroids(centroids))
    out_packed = jax.block_until_ready(cossim_packed(x, ct_packed, nclass=nclass))
    assert out_packed.shape == (B, nclass)
    assert jnp.allclose(out_packed, out, atol=1e-6), "prepacked path mismatch"

    # Leading-dims check (PyTorch forward supports [..., nfeat]).
    x3 = x.reshape(2, 4, nfeat)
    out3 = jax.block_until_ready(cossim(x3, centroids))
    assert out3.shape == (2, 4, nclass)
    assert jnp.allclose(out3.reshape(B, nclass), out, atol=1e-6), "reshape mismatch"

    print("KERNEL_OK")
</pallas_src>

<mosaic_0001>
module attributes {stable_mosaic.version = 11 : i64} {
  func.func @_matmul_kernel(%arg0: i32, %arg1: i32, %arg2: i32, %arg3: memref<8x128xf32, #tpu.memory_space<vmem>>, %arg4: memref<128x128xf32, #tpu.memory_space<vmem>>, %arg5: memref<8x128xf32, #tpu.memory_space<vmem>>) attributes {dimension_semantics = [#tpu.dimension_semantics<parallel>, #tpu.dimension_semantics<parallel>, #tpu.dimension_semantics<arbitrary>], iteration_bounds = array<i64: 1, 1, 1>, scalar_prefetch = 0 : i64, scratch_operands = 0 : i64, tpu.core_type = #tpu.core_type<tc>, window_params = [{transform_indices = @transform_0, window_bounds = array<i64: 8, 128>}, {transform_indices = @transform_1, window_bounds = array<i64: 128, 128>}, {transform_indices = @transform_2, window_bounds = array<i64: 8, 128>}]} {
    %c0 = arith.constant 0 : index
    %c0_0 = arith.constant 0 : index
    %0 = vector.load %arg3[%c0, %c0_0] : memref<8x128xf32, #tpu.memory_space<vmem>>, vector<8x128xf32>
    %c0_1 = arith.constant 0 : index
    %c0_2 = arith.constant 0 : index
    %1 = vector.load %arg4[%c0_1, %c0_2] : memref<128x128xf32, #tpu.memory_space<vmem>>, vector<128x128xf32>
    %cst = arith.constant dense<0.000000e+00> : vector<8x128xf32>
    %2 = tpu.matmul %0, %1, %cst {dimension_numbers = #tpu.dot_dimension_numbers<[1], [0], [0], [1], [0, 0, 1, 1], [], []>} : vector<8x128xf32>, vector<128x128xf32>, vector<8x128xf32> -> vector<8x128xf32>
    %c0_3 = arith.constant 0 : index
    %c0_4 = arith.constant 0 : index
    %3 = vector.load %arg5[%c0_3, %c0_4] : memref<8x128xf32, #tpu.memory_space<vmem>>, vector<8x128xf32>
    tpu.vector_store %arg5[%c0_3, %c0_4], %2 {strides = array<i32>} : memref<8x128xf32, #tpu.memory_space<vmem>>, vector<8x128xf32>,
    return
  }
  func.func @transform_0(%arg0: i32, %arg1: i32, %arg2: i32) -> (i32, i32) {
    %c0_i32 = arith.constant 0 : i32
    return %arg0, %arg2 : i32, i32
  }
  func.func @transform_1(%arg0: i32, %arg1: i32, %arg2: i32) -> (i32, i32) {
    %c0_i32 = arith.constant 0 : i32
    return %arg2, %arg1 : i32, i32
  }
  func.func @transform_2(%arg0: i32, %arg1: i32, %arg2: i32) -> (i32, i32) {
    %c0_i32 = arith.constant 0 : i32
    return %arg0, %arg1 : i32, i32
  }
}

</mosaic_0001>

<llo_original>
// kernel: cossim.1
$region0: #{cossim.1}
  #allocation0 [shape = 'u32[]', space=smem, size = 0x4, offset = 0x4, fixed_abs, tag = 'smem constant byte address 0x4 - core index']
  #allocation1 [shape = 'u32[144,128]{1,0:T(1,128)}', space=vmem, size = 0x12000, scoped, tag = 'internal scratch']
  %s0 = inlined_call_operand.vmem [shape: f32[8,128], index: 0, kind: input, shape index: {}]
  %s1 = inlined_call_operand.vmem [shape: f32[128,128], index: 1, kind: input, shape index: {}]
  %s2 = inlined_call_operand.hbm [shape: f32[8,128], index: 2, kind: output, shape index: {}]
  %s3 = sld [smem:[#allocation0]]
  $region18: #{cossim.1} parent=0
    _
  %s5 = ssub.s32 1, %s3
  %s6 = scalar_select 0, %s5, %s3
  $region1: #{cossim.1} parent=0
    #allocation2 [shape = 'u8[4096]{0}', space=vmem, size = 0x1000, scoped, tag = 'output window, operand 0, single buffered']
    #allocation3 [shape = 's32[1]{0}', space=sflag, size = 0x4, scoped, tag = 'scoped memory for cossim.1']
    %7 = vsyncpa [#allocation3], 0
    // Predicated region
    $region2: #{cossim.1} parent=1 // pred_check
      _
    $region3: #{cossim.1} parent=1 // pred_check_branch
      %9 = sbr.rel (0) target = $region5
    $region4: #{cossim.1} parent=1 // pred_region
      _
    $region5: #{cossim.1} parent=1 // pred_fallthru
      _
    // Predicated region
    $region6: #{cossim.1} parent=1 // pred_check
      _
    $region7: #{cossim.1} parent=1 // pred_check_branch
      %11 = sbr.rel (0) target = $region9
    $region8: #{cossim.1} parent=1 // pred_region
      _
    $region9: #{cossim.1} parent=1 // pred_fallthru
      _
    %v12 = vld [vmem:[%s0] sm:$0xff]
    %v13 = vld [vmem:[%s1] sm:$0xff]
    %v14 = vld [vmem:[%s1 + $0x8] sm:$0xff]
    %v15 = vld [vmem:[%s1 + $0x10] sm:$0xff]
    %v16 = vld [vmem:[%s1 + $0x18] sm:$0xff]
    %v17 = vld [vmem:[%s1 + $0x20] sm:$0xff]
    %v18 = vld [vmem:[%s1 + $0x28] sm:$0xff]
    %v19 = vld [vmem:[%s1 + $0x30] sm:$0xff]
    %v20 = vld [vmem:[%s1 + $0x38] sm:$0xff]
    %v21 = vld [vmem:[%s1 + $0x40] sm:$0xff]
    %v22 = vld [vmem:[%s1 + $0x48] sm:$0xff]
    %v23 = vld [vmem:[%s1 + $0x50] sm:$0xff]
    %v24 = vld [vmem:[%s1 + $0x58] sm:$0xff]
    %v25 = vld [vmem:[%s1 + $0x60] sm:$0xff]
    %v26 = vld [vmem:[%s1 + $0x68] sm:$0xff]
    %v27 = vld [vmem:[%s1 + $0x70] sm:$0xff]
    %v28 = vld [vmem:[%s1 + $0x78] sm:$0xff]
    %29 = vmatprep.subr.mxu0 0.0
    %30 = vmatpush1.msra.mxu0 %v28
    %31 = vmatprep.subr.mxu0 0.0
    %32 = vmatpush1.msra.mxu0 %v27
    %33 = vmatprep.subr.mxu0 0.0
    %34 = vmatpush1.msra.mxu0 %v26
    %35 = vmatprep.subr.mxu0 0.0
    %36 = vmatpush1.msra.mxu0 %v25
    %37 = vmatprep.subr.mxu0 0.0
    %38 = vmatpush1.msra.mxu0 %v24
    %39 = vmatprep.subr.mxu0 0.0
    %40 = vmatpush1.msra.mxu0 %v23
    %41 = vmatprep.subr.mxu0 0.0
    %42 = vmatpush1.msra.mxu0 %v22
    %43 = vmatprep.subr.mxu0 0.0
    %44 = vmatpush1.msra.mxu0 %v21
    %45 = vmatprep.subr.mxu0 0.0
    %46 = vmatpush1.msra.mxu0 %v20
    %47 = vmatprep.subr.mxu0 0.0
    %48 = vmatpush1.msra.mxu0 %v19
    %49 = vmatprep.subr.mxu0 0.0
    %50 = vmatpush1.msra.mxu0 %v18
    %51 = vmatprep.subr.mxu0 0.0
    %52 = vmatpush1.msra.mxu0 %v17
    %53 = vmatprep.subr.mxu0 0.0
    %54 = vmatpush1.msra.mxu0 %v16
    %55 = vmatprep.subr.mxu0 0.0
    %56 = vmatpush1.msra.mxu0 %v15
    %57 = vmatprep.subr.mxu0 0.0
    %58 = vmatpush1.msra.mxu0 %v14
    %59 = vmatprep.subr.mxu0 0.0
    %60 = vmatpush1.msra.mxu0 %v13
    %61 = vmatprep.subr.mxu0 0.0
    %62 = vmatpush2.msra.mxu0 0.0
    %63 = vmatprep.subr.mxu0 0.0
    %64 = vmatpush2.msra.mxu0 0.0
    %65 = vmatprep.subr.mxu0 0.0
    %66 = vmatpush2.msra.mxu0 0.0
    %67 = vmatprep.subr.mxu0 0.0
    %68 = vmatpush2.msra.mxu0 0.0
    %69 = vmatprep.subr.mxu0 0.0
    %70 = vmatpush2.msra.mxu0 0.0
    %71 = vmatprep.subr.mxu0 0.0
    %72 = vmatpush2.msra.mxu0 0.0
    %73 = vmatprep.subr.mxu0 0.0
    %74 = vmatpush2.msra.mxu0 0.0
    %75 = vmatprep.subr.mxu0 0.0
    %76 = vmatpush2.msra.mxu0 0.0
    %77 = vmatprep.subr.mxu0 0.0
    %78 = vmatpush2.msra.mxu0 0.0
    %79 = vmatprep.subr.mxu0 0.0
    %80 = vmatpush2.msra.mxu0 0.0
    %81 = vmatprep.subr.mxu0 0.0
    %82 = vmatpush2.msra.mxu0 0.0
    %83 = vmatprep.subr.mxu0 0.0
    %84 = vmatpush2.msra.mxu0 0.0
    %85 = vmatprep.subr.mxu0 0.0
    %86 = vmatpush2.msra.mxu0 0.0
    %87 = vmatprep.subr.mxu0 0.0
    %88 = vmatpush2.msra.mxu0 0.0
    %89 = vmatprep.subr.mxu0 0.0
    %90 = vmatpush2.msra.mxu0 0.0
    %91 = vmatprep.subr.mxu0 0.0
    %92 = vmatpush2.msra.mxu0 0.0
    %93 = vmatprep.mubr.f32.mxu0 0.0
    %94 = vmatmul.mubr.f32.gmra.mxu0 %v12
    %v95 = vpop.f32.mrf.mxu0
    %v96 = vadd.f32 0.0, %v95
    %v97 = vpop.f32.mrf.mxu0
    %98 = vdwg.mxu0
    %99 = vst [vmem:[#allocation2] sm:$0xff] %v96
    // Predicated region
    $region10: #{cossim.1} parent=1 // pred_check
      _
    $region11: #{cossim.1} parent=1 // pred_check_branch
      %101 = sbr.rel (0) target = $region13
    $region12: #{cossim.1} parent=1 // pred_region
      %s103 = ssub.s32 128, 128
      %104 = vsyncadd [#allocation3], %s103
      %s106 = sshll.u32 [#allocation2], 4
      %s107 = int_to_ptr.vmem [resolvable:$true] %s106
      %109 = dma.vmem_to_hbm [thread:$0]  %s107, 128, %s2, [#allocation3]
    $region13: #{cossim.1} parent=1 // pred_fallthru
      _
    // Predicated region
    $region14: #{cossim.1} parent=1 // pred_check
      _
    $region15: #{cossim.1} parent=1 // pred_check_branch
      %111 = sbr.rel (0) target = $region17
    $region16: #{cossim.1} parent=1 // pred_region
      %112 = dma.done [#allocation3], 128
    $region17: #{cossim.1} parent=1 // pred_fallthru
      _
    %113 = vsyncpa [#allocation3], 1

</llo_original>
